<compile_context>
chip_gen: v7x
topology: tpu7x:2x2x1
jax: 0.10.0
libtpu: 0.0.40
codegen_flags: <defaults>
</compile_context>

<pallas_src>
import functools

import jax
import jax.numpy as jnp
from jax.experimental import pallas as pl
from jax.experimental.pallas import tpu as pltpu


LANE = 128      # pad feature dims to multiples of the lane width
SUBLANE = 8     # batch tiles must be multiples of the sublane width


def _round_up(n, m):
    return ((n + m - 1) // m) * m


def _mlp_kernel(num_layers, x_ref, *refs):
    """Fused MLP forward on one (TB, in_pad) batch tile.

    refs = (w0, b0, w1, b1, ..., out_ref).  Weights are pre-transposed to
    (in, out), zero-padded to 128-lane multiples, bf16; biases are f32 (1, out).
    Elementwise math (bias add, ReLU) stays in f32; only matmul operands are
    cast to bf16 (f32 accumulation via preferred_element_type).
    """
    out_ref = refs[-1]
    param_refs = refs[:-1]

    h = x_ref[...]                                    # f32 (TB, in_pad)
    for layer in range(num_layers):
        w = param_refs[2 * layer][...]                # bf16 (in, out)
        b = param_refs[2 * layer + 1][...]            # f32  (1, out)
        h = jnp.dot(h.astype(w.dtype), w,
                    preferred_element_type=jnp.float32) + b
        if layer < num_layers - 1:
            h = jnp.maximum(h, 0.0)                   # ReLU on hidden layers only
    out_ref[...] = h.astype(out_ref.dtype)


def prepare_params(weights, biases, param_dtype=jnp.bfloat16):
    """One-time host-side prep (call once, outside the hot path).

    PyTorch nn.Linear stores (out, in) and computes y = x @ W.T + b.  We
    transpose to (in, out), zero-pad both feature dims to 128-lane multiples
    (zero columns/rows -> padded lanes never contaminate real outputs), cast
    weights to bf16, and keep biases as f32 (1, out_pad).
    """
    params = []
    for w, b in zip(weights, biases):
        w = jnp.asarray(w, jnp.float32)
        b = jnp.asarray(b, jnp.float32)
        out_d, in_d = w.shape
        in_p, out_p = _round_up(in_d, LANE), _round_up(out_d, LANE)
        wt = jnp.zeros((in_p, out_p), jnp.float32).at[:in_d, :out_d].set(w.T)
        bp = jnp.zeros((1, out_p), jnp.float32).at[0, :out_d].set(b)
        params.append(wt.astype(param_dtype))
        params.append(bp)
    return params


def _vmem_limit_bytes(tb, in_pad, out_pad, hid_max, params):
    """Budget = 2x resident params + double-buffered activation tiles +
    live-intermediate/spill slack + margin; capped at 64 MiB (v7x-safe)."""
    w_bytes = sum(p.size * p.dtype.itemsize for p in params)
    act_bytes = 2 * 2 * tb * (in_pad + out_pad) * 4   # double-buffered in/out tiles
    live_bytes = 2 * tb * hid_max * 4                 # intermediate h + spill slack
    est = 2 * w_bytes + act_bytes + live_bytes + (4 << 20)
    return int(min(max(est, 16 << 20), 64 << 20))


@functools.partial(jax.jit, static_argnames=("num_cls", "batch_tile"))
def deep_nn_forward(x, params, *, num_cls, batch_tile=512):
    """DeepNN forward.  x: (B, in_sz) f32.  params: prepare_params() output."""
    num_layers = len(params) // 2
    B, in_sz = x.shape
    in_pad = params[0].shape[0]
    out_pad = params[-2].shape[1]
    hid_max = max(p.shape[1] for p in params[0::2])

    # Batch tile: biggest multiple of 8 up to batch_tile that covers B.
    tb = min(batch_tile, _round_up(B, SUBLANE))
    b_pad = _round_up(B, tb)

    # Zero-pad input rows/lanes so padding contributes nothing.
    x_p = jnp.zeros((b_pad, in_pad), jnp.float32).at[:B, :in_sz].set(x)

    grid = (b_pad // tb,)
    x_spec = pl.BlockSpec((tb, in_pad), lambda i: (i, 0))
    # Constant index_map -> weights/biases stay resident across batch tiles.
    param_specs = [pl.BlockSpec(p.shape, lambda i: (0, 0)) for p in params]
    out_spec = pl.BlockSpec((tb, out_pad), lambda i: (i, 0))

    out_padded = pl.pallas_call(
        functools.partial(_mlp_kernel, num_layers),
        out_shape=jax.ShapeDtypeStruct((b_pad, out_pad), jnp.float32),
        grid=grid,
        in_specs=[x_spec] + param_specs,
        out_specs=out_spec,
        compiler_params=pltpu.CompilerParams(
            dimension_semantics=("parallel",),   # shard batch tiles across TCs (v7x)
            vmem_limit_bytes=_vmem_limit_bytes(tb, in_pad, out_pad, hid_max, params),
        ),
    )(x_p, *params)

    return out_padded[:B, :num_cls]


def _reference_forward_f32(x, weights, biases):
    """Pure-JAX f32 reference replicating nn.Sequential semantics."""
    h = x
    n = len(weights)
    for i, (w, b) in enumerate(zip(weights, biases)):
        h = h @ w.T + b
        if i < n - 1:
            h = jnp.maximum(h, 0.0)
    return h


def _reference_forward_bf16(x, weights, biases):
    """Reference that mirrors the kernel's bf16 matmul operands / f32 accum."""
    h = x
    n = len(weights)
    for i, (w, b) in enumerate(zip(weights, biases)):
        wq = w.astype(jnp.bfloat16).astype(jnp.float32)
        hq = h.astype(jnp.bfloat16).astype(jnp.float32)
        h = hq @ wq.T + b
        if i < n - 1:
            h = jnp.maximum(h, 0.0)
    return h


if __name__ == "__main__":
    # Small shapes consistent with DeepNN(in_sz, hid_sz, depth, num_cls=2).
    B, in_sz, hid_sz, depth, num_cls = 8, 32, 32, 4, 2

    key = jax.random.PRNGKey(0)
    keys = jax.random.split(key, 2 * depth + 1)

    # Deterministic synthetic parameters (PyTorch Linear layout: (out, in)).
    dims = [in_sz] + [hid_sz] * (depth - 1) + [num_cls]
    weights, biases = [], []
    for i in range(depth):
        fan_in, fan_out = dims[i], dims[i + 1]
        w = jax.random.normal(keys[2 * i], (fan_out, fan_in), jnp.float32) * 0.1
        b = jax.random.normal(keys[2 * i + 1], (fan_out,), jnp.float32) * 0.1
        weights.append(w)
        biases.append(b)

    x = jax.random.normal(keys[-1], (B, in_sz), jnp.float32)

    params = prepare_params(weights, biases)          # one-time prep
    out = deep_nn_forward(x, params, num_cls=num_cls)
    out = jax.block_until_ready(out)

    ref_q = _reference_forward_bf16(x, weights, biases)    # matches kernel quantization
    ref_f = _reference_forward_f32(x, weights, biases)     # PyTorch-equivalent f32

    assert out.shape == (B, num_cls)
    assert jnp.allclose(out, ref_q, atol=2e-3, rtol=2e-3)
    assert jnp.allclose(out, ref_f, atol=5e-2, rtol=5e-2)

    print("KERNEL_OK")
</pallas_src>

<mosaic_0001>
module attributes {stable_mosaic.version = 11 : i64} {
  func.func @_mlp_kernel(%arg0: i32, %arg1: memref<8x128xf32, #tpu.memory_space<vmem>>, %arg2: memref<128x128xbf16, #tpu.memory_space<vmem>>, %arg3: memref<1x128xf32, #tpu.memory_space<vmem>>, %arg4: memref<128x128xbf16, #tpu.memory_space<vmem>>, %arg5: memref<1x128xf32, #tpu.memory_space<vmem>>, %arg6: memref<128x128xbf16, #tpu.memory_space<vmem>>, %arg7: memref<1x128xf32, #tpu.memory_space<vmem>>, %arg8: memref<128x128xbf16, #tpu.memory_space<vmem>>, %arg9: memref<1x128xf32, #tpu.memory_space<vmem>>, %arg10: memref<8x128xf32, #tpu.memory_space<vmem>>) attributes {dimension_semantics = [#tpu.dimension_semantics<parallel>], iteration_bounds = array<i64: 1>, scalar_prefetch = 0 : i64, scratch_operands = 0 : i64, tpu.core_type = #tpu.core_type<tc>, window_params = [{transform_indices = @transform_0, window_bounds = array<i64: 8, 128>}, {pipeline_mode = #tpu.pipeline_mode<synchronous>, transform_indices = @transform_1, window_bounds = array<i64: 128, 128>}, {pipeline_mode = #tpu.pipeline_mode<synchronous>, transform_indices = @transform_2, window_bounds = array<i64: 1, 128>}, {pipeline_mode = #tpu.pipeline_mode<synchronous>, transform_indices = @transform_3, window_bounds = array<i64: 128, 128>}, {pipeline_mode = #tpu.pipeline_mode<synchronous>, transform_indices = @transform_4, window_bounds = array<i64: 1, 128>}, {pipeline_mode = #tpu.pipeline_mode<synchronous>, transform_indices = @transform_5, window_bounds = array<i64: 128, 128>}, {pipeline_mode = #tpu.pipeline_mode<synchronous>, transform_indices = @transform_6, window_bounds = array<i64: 1, 128>}, {pipeline_mode = #tpu.pipeline_mode<synchronous>, transform_indices = @transform_7, window_bounds = array<i64: 128, 128>}, {pipeline_mode = #tpu.pipeline_mode<synchronous>, transform_indices = @transform_8, window_bounds = array<i64: 1, 128>}, {transform_indices = @transform_9, window_bounds = array<i64: 8, 128>}]} {
    %c0 = arith.constant 0 : index
    %c0_0 = arith.constant 0 : index
    %0 = vector.load %arg1[%c0, %c0_0] : memref<8x128xf32, #tpu.memory_space<vmem>>, vector<8x128xf32>
    %c0_1 = arith.constant 0 : index
    %c0_2 = arith.constant 0 : index
    %1 = vector.load %arg2[%c0_1, %c0_2] : memref<128x128xbf16, #tpu.memory_space<vmem>>, vector<128x128xbf16>
    %c0_3 = arith.constant 0 : index
    %c0_4 = arith.constant 0 : index
    %2 = vector.load %arg3[%c0_3, %c0_4] : memref<1x128xf32, #tpu.memory_space<vmem>>, vector<1x128xf32>
    %3 = arith.truncf %0 : vector<8x128xf32> to vector<8x128xbf16>
    %cst = arith.constant dense<0.000000e+00> : vector<8x128xf32>
    %4 = tpu.matmul %3, %1, %cst {dimension_numbers = #tpu.dot_dimension_numbers<[1], [0], [0], [1], [0, 0, 1, 1], [], []>} : vector<8x128xbf16>, vector<128x128xbf16>, vector<8x128xf32> -> vector<8x128xf32>
    %5 = vector.broadcast %2 : vector<1x128xf32> to vector<8x128xf32>
    %6 = arith.addf %4, %5 : vector<8x128xf32>
    %cst_5 = arith.constant 0.000000e+00 : f32
    %7 = vector.broadcast %cst_5 : f32 to vector<8x128xf32>
    %8 = arith.maximumf %6, %7 : vector<8x128xf32>
    %c0_6 = arith.constant 0 : index
    %c0_7 = arith.constant 0 : index
    %9 = vector.load %arg4[%c0_6, %c0_7] : memref<128x128xbf16, #tpu.memory_space<vmem>>, vector<128x128xbf16>
    %c0_8 = arith.constant 0 : index
    %c0_9 = arith.constant 0 : index
    %10 = vector.load %arg5[%c0_8, %c0_9] : memref<1x128xf32, #tpu.memory_space<vmem>>, vector<1x128xf32>
    %11 = arith.truncf %8 : vector<8x128xf32> to vector<8x128xbf16>
    %cst_10 = arith.constant dense<0.000000e+00> : vector<8x128xf32>
    %12 = tpu.matmul %11, %9, %cst_10 {dimension_numbers = #tpu.dot_dimension_numbers<[1], [0], [0], [1], [0, 0, 1, 1], [], []>} : vector<8x128xbf16>, vector<128x128xbf16>, vector<8x128xf32> -> vector<8x128xf32>
    %13 = vector.broadcast %10 : vector<1x128xf32> to vector<8x128xf32>
    %14 = arith.addf %12, %13 : vector<8x128xf32>
    %cst_11 = arith.constant 0.000000e+00 : f32
    %15 = vector.broadcast %cst_11 : f32 to vector<8x128xf32>
    %16 = arith.maximumf %14, %15 : vector<8x128xf32>
    %c0_12 = arith.constant 0 : index
    %c0_13 = arith.constant 0 : index
    %17 = vector.load %arg6[%c0_12, %c0_13] : memref<128x128xbf16, #tpu.memory_space<vmem>>, vector<128x128xbf16>
    %c0_14 = arith.constant 0 : index
    %c0_15 = arith.constant 0 : index
    %18 = vector.load %arg7[%c0_14, %c0_15] : memref<1x128xf32, #tpu.memory_space<vmem>>, vector<1x128xf32>
    %19 = arith.truncf %16 : vector<8x128xf32> to vector<8x128xbf16>
    %cst_16 = arith.constant dense<0.000000e+00> : vector<8x128xf32>
    %20 = tpu.matmul %19, %17, %cst_16 {dimension_numbers = #tpu.dot_dimension_numbers<[1], [0], [0], [1], [0, 0, 1, 1], [], []>} : vector<8x128xbf16>, vector<128x128xbf16>, vector<8x128xf32> -> vector<8x128xf32>
    %21 = vector.broadcast %18 : vector<1x128xf32> to vector<8x128xf32>
    %22 = arith.addf %20, %21 : vector<8x128xf32>
    %cst_17 = arith.constant 0.000000e+00 : f32
    %23 = vector.broadcast %cst_17 : f32 to vector<8x128xf32>
    %24 = arith.maximumf %22, %23 : vector<8x128xf32>
    %c0_18 = arith.constant 0 : index
    %c0_19 = arith.constant 0 : index
    %25 = vector.load %arg8[%c0_18, %c0_19] : memref<128x128xbf16, #tpu.memory_space<vmem>>, vector<128x128xbf16>
    %c0_20 = arith.constant 0 : index
    %c0_21 = arith.constant 0 : index
    %26 = vector.load %arg9[%c0_20, %c0_21] : memref<1x128xf32, #tpu.memory_space<vmem>>, vector<1x128xf32>
    %27 = arith.truncf %24 : vector<8x128xf32> to vector<8x128xbf16>
    %cst_22 = arith.constant dense<0.000000e+00> : vector<8x128xf32>
    %28 = tpu.matmul %27, %25, %cst_22 {dimension_numbers = #tpu.dot_dimension_numbers<[1], [0], [0], [1], [0, 0, 1, 1], [], []>} : vector<8x128xbf16>, vector<128x128xbf16>, vector<8x128xf32> -> vector<8x128xf32>
    %29 = vector.broadcast %26 : vector<1x128xf32> to vector<8x128xf32>
    %30 = arith.addf %28, %29 : vector<8x128xf32>
    %c0_23 = arith.constant 0 : index
    %c0_24 = arith.constant 0 : index
    %31 = vector.load %arg10[%c0_23, %c0_24] : memref<8x128xf32, #tpu.memory_space<vmem>>, vector<8x128xf32>
    tpu.vector_store %arg10[%c0_23, %c0_24], %30 {strides = array<i32>} : memref<8x128xf32, #tpu.memory_space<vmem>>, vector<8x128xf32>,
    return
  }
  func.func @transform_0(%arg0: i32) -> (i32, i32) {
    %c0_i32 = arith.constant 0 : i32
    %c0_i32_0 = arith.constant 0 : i32
    return %arg0, %c0_i32 : i32, i32
  }
  func.func @transform_1(%arg0: i32) -> (i32, i32) {
    %c0_i32 = arith.constant 0 : i32
    %c0_i32_0 = arith.constant 0 : i32
    %c0_i32_1 = arith.constant 0 : i32
    return %c0_i32, %c0_i32_0 : i32, i32
  }
  func.func @transform_2(%arg0: i32) -> (i32, i32) {
    %c0_i32 = arith.constant 0 : i32
    %c0_i32_0 = arith.constant 0 : i32
    %c0_i32_1 = arith.constant 0 : i32
    return %c0_i32, %c0_i32_0 : i32, i32
  }
  func.func @transform_3(%arg0: i32) -> (i32, i32) {
    %c0_i32 = arith.constant 0 : i32
    %c0_i32_0 = arith.constant 0 : i32
    %c0_i32_1 = arith.constant 0 : i32
    return %c0_i32, %c0_i32_0 : i32, i32
  }
  func.func @transform_4(%arg0: i32) -> (i32, i32) {
    %c0_i32 = arith.constant 0 : i32
    %c0_i32_0 = arith.constant 0 : i32
    %c0_i32_1 = arith.constant 0 : i32
    return %c0_i32, %c0_i32_0 : i32, i32
  }
  func.func @transform_5(%arg0: i32) -> (i32, i32) {
    %c0_i32 = arith.constant 0 : i32
    %c0_i32_0 = arith.constant 0 : i32
    %c0_i32_1 = arith.constant 0 : i32
    return %c0_i32, %c0_i32_0 : i32, i32
  }
  func.func @transform_6(%arg0: i32) -> (i32, i32) {
    %c0_i32 = arith.constant 0 : i32
    %c0_i32_0 = arith.constant 0 : i32
    %c0_i32_1 = arith.constant 0 : i32
    return %c0_i32, %c0_i32_0 : i32, i32
  }
  func.func @transform_7(%arg0: i32) -> (i32, i32) {
    %c0_i32 = arith.constant 0 : i32
    %c0_i32_0 = arith.constant 0 : i32
    %c0_i32_1 = arith.constant 0 : i32
    return %c0_i32, %c0_i32_0 : i32, i32
  }
  func.func @transform_8(%arg0: i32) -> (i32, i32) {
    %c0_i32 = arith.constant 0 : i32
    %c0_i32_0 = arith.constant 0 : i32
    %c0_i32_1 = arith.constant 0 : i32
    return %c0_i32, %c0_i32_0 : i32, i32
  }
  func.func @transform_9(%arg0: i32) -> (i32, i32) {
    %c0_i32 = arith.constant 0 : i32
    %c0_i32_0 = arith.constant 0 : i32
    return %arg0, %c0_i32 : i32, i32
  }
}

</mosaic_0001>

<llo_original>
// kernel: deep_nn_forward.1
$region0: #{deep_nn_forward.1}
  #allocation0 [shape = 'u32[]', space=smem, size = 0x4, offset = 0x4, fixed_abs, tag = 'smem constant byte address 0x4 - core index']
  #allocation1 [shape = 'u32[144,128]{1,0:T(1,128)}', space=vmem, size = 0x12000, scoped, tag = 'internal scratch']
  %s0 = inlined_call_operand.vmem [shape: f32[8,128], index: 0, kind: input, shape index: {}]
  %s1 = inlined_call_operand.hbm [shape: bf16[128,128], index: 1, kind: input, shape index: {}]
  %s2 = inlined_call_operand.hbm [shape: f32[1,128], index: 2, kind: input, shape index: {}]
  %s3 = inlined_call_operand.hbm [shape: bf16[128,128], index: 3, kind: input, shape index: {}]
  %s4 = inlined_call_operand.hbm [shape: f32[1,128], index: 4, kind: input, shape index: {}]
  %s5 = inlined_call_operand.hbm [shape: bf16[128,128], index: 5, kind: input, shape index: {}]
  %s6 = inlined_call_operand.hbm [shape: f32[1,128], index: 6, kind: input, shape index: {}]
  %s7 = inlined_call_operand.vmem [shape: bf16[128,128], index: 7, kind: input, shape index: {}]
  %s8 = inlined_call_operand.vmem [shape: f32[1,128], index: 8, kind: input, shape index: {}]
  %s9 = inlined_call_operand.vmem [shape: f32[8,128], index: 9, kind: output, shape index: {}]
  %s10 = sld [smem:[#allocation0]]
  $region70: #{deep_nn_forward.1} parent=0
    _
  %s12 = ssub.s32 1, %s10
  %s13 = scalar_select 0, %s12, %s10
  $region1: #{deep_nn_forward.1} parent=0
    #allocation2 [shape = 'u8[32768]{0}', space=vmem, size = 0x8000, scoped, tag = 'input window, operand 1, single buffered']
    #allocation3 [shape = 's32[1]{0}', space=sflag, size = 0x4, scoped, tag = 'scoped memory for deep_nn_forward.1']
    #allocation4 [shape = 'u8[512]{0}', space=vmem, size = 0x400, scoped, tag = 'input window, operand 2, single buffered']
    #allocation5 [shape = 's32[1]{0}', space=sflag, size = 0x4, scoped, tag = 'scoped memory for deep_nn_forward.1']
    #allocation6 [shape = 'u8[32768]{0}', space=vmem, size = 0x8000, scoped, tag = 'input window, operand 3, single buffered']
    #allocation7 [shape = 'u8[512]{0}', space=vmem, size = 0x400, scoped, tag = 'input window, operand 4, single buffered']
    #allocation8 [shape = 's32[1]{0}', space=sflag, size = 0x4, scoped, tag = 'scoped memory for deep_nn_forward.1']
    #allocation9 [shape = 'u8[32768]{0}', space=vmem, size = 0x8000, scoped, tag = 'input window, operand 5, single buffered']
    #allocation10 [shape = 'u8[512]{0}', space=vmem, size = 0x400, scoped, tag = 'input window, operand 6, single buffered']
    #allocation11 [shape = 's32[1]{0}', space=sflag, size = 0x4, scoped, tag = 'scoped memory for deep_nn_forward.1']
    %14 = vsyncpa [#allocation3], 0
    %15 = vsyncpa [#allocation5], 0
    %16 = vsyncpa [#allocation8], 0
    %17 = vsyncpa [#allocation11], 0
    // Predicated region
    $region2: #{deep_nn_forward.1} parent=1 // pred_check
      _
    $region3: #{deep_nn_forward.1} parent=1 // pred_check_branch
      %19 = sbr.rel (0) target = $region5
    $region4: #{deep_nn_forward.1} parent=1 // pred_region
      _
    $region5: #{deep_nn_forward.1} parent=1 // pred_fallthru
      _
    // Predicated region
    $region6: #{deep_nn_forward.1} parent=1 // pred_check
      _
    $region7: #{deep_nn_forward.1} parent=1 // pred_check_branch
      %21 = sbr.rel (0) target = $region9
    $region8: #{deep_nn_forward.1} parent=1 // pred_region
      %s23 = ssub.s32 1024, 1024
      %24 = vsyncadd [#allocation3], %s23
      %s25 = sshll.u32 [#allocation2], 4
      %s26 = int_to_ptr.vmem [resolvable:$true] %s25
      %31 = dma.hbm_to_vmem [thread:$0]  %s1, 1024, %s26, [#allocation3], 64, 64, 4
    $region9: #{deep_nn_forward.1} parent=1 // pred_fallthru
      _
    // Predicated region
    $region10: #{deep_nn_forward.1} parent=1 // pred_check
      _
    $region11: #{deep_nn_forward.1} parent=1 // pred_check_branch
      %33 = sbr.rel (0) target = $region13
    $region12: #{deep_nn_forward.1} parent=1 // pred_region
      %s35 = ssub.s32 16, 16
      %36 = vsyncadd [#allocation5], %s35
      %s38 = sshll.u32 [#allocation4], 4
      %s39 = int_to_ptr.vmem [resolvable:$true] %s38
      %41 = dma.hbm_to_vmem [thread:$0]  %s2, 16, %s39, [#allocation5]
    $region13: #{deep_nn_forward.1} parent=1 // pred_fallthru
      _
    // Predicated region
    $region14: #{deep_nn_forward.1} parent=1 // pred_check
      _
    $region15: #{deep_nn_forward.1} parent=1 // pred_check_branch
      %43 = sbr.rel (0) target = $region17
    $region16: #{deep_nn_forward.1} parent=1 // pred_region
      %s45 = ssub.s32 1024, 1024
      %46 = vsyncadd [#allocation5], %s45
      %s47 = sshll.u32 [#allocation6], 4
      %s48 = int_to_ptr.vmem [resolvable:$true] %s47
      %53 = dma.hbm_to_vmem [thread:$0]  %s3, 1024, %s48, [#allocation5], 64, 64, 4
    $region17: #{deep_nn_forward.1} parent=1 // pred_fallthru
      _
    // Predicated region
    $region18: #{deep_nn_forward.1} parent=1 // pred_check
      _
    $region19: #{deep_nn_forward.1} parent=1 // pred_check_branch
      %55 = sbr.rel (0) target = $region21
    $region20: #{deep_nn_forward.1} parent=1 // pred_region
      %s57 = ssub.s32 16, 16
      %58 = vsyncadd [#allocation8], %s57
      %s60 = sshll.u32 [#allocation7], 4
      %s61 = int_to_ptr.vmem [resolvable:$true] %s60
      %63 = dma.hbm_to_vmem [thread:$0]  %s4, 16, %s61, [#allocation8]
    $region21: #{deep_nn_forward.1} parent=1 // pred_fallthru
      _
    // Predicated region
    $region22: #{deep_nn_forward.1} parent=1 // pred_check
      _
    $region23: #{deep_nn_forward.1} parent=1 // pred_check_branch
      %65 = sbr.rel (0) target = $region25
    $region24: #{deep_nn_forward.1} parent=1 // pred_region
      %s67 = ssub.s32 1024, 1024
      %68 = vsyncadd [#allocation8], %s67
      %s69 = sshll.u32 [#allocation9], 4
      %s70 = int_to_ptr.vmem [resolvable:$true] %s69
      %75 = dma.hbm_to_vmem [thread:$0]  %s5, 1024, %s70, [#allocation8], 64, 64, 4
    $region25: #{deep_nn_forward.1} parent=1 // pred_fallthru
      _
    // Predicated region
    $region26: #{deep_nn_forward.1} parent=1 // pred_check
      _
    $region27: #{deep_nn_forward.1} parent=1 // pred_check_branch
      %77 = sbr.rel (0) target = $region29
    $region28: #{deep_nn_forward.1} parent=1 // pred_region
      %s79 = ssub.s32 16, 16
      %80 = vsyncadd [#allocation11], %s79
      %s82 = sshll.u32 [#allocation10], 4
      %s83 = int_to_ptr.vmem [resolvable:$true] %s82
      %85 = dma.hbm_to_vmem [thread:$0]  %s6, 16, %s83, [#allocation11]
    $region29: #{deep_nn_forward.1} parent=1 // pred_fallthru
      _
    // Predicated region
    $region30: #{deep_nn_forward.1} parent=1 // pred_check
      _
    $region31: #{deep_nn_forward.1} parent=1 // pred_check_branch
      %87 = sbr.rel (0) target = $region33
    $region32: #{deep_nn_forward.1} parent=1 // pred_region
      _
    $region33: #{deep_nn_forward.1} parent=1 // pred_fallthru
      _
    // Predicated region
    $region34: #{deep_nn_forward.1} parent=1 // pred_check
      _
    $region35: #{deep_nn_forward.1} parent=1 // pred_check_branch
      %89 = sbr.rel (0) target = $region37
    $region36: #{deep_nn_forward.1} parent=1 // pred_region
      _
    $region37: #{deep_nn_forward.1} parent=1 // pred_fallthru
      _
    // Predicated region
    $region38: #{deep_nn_forward.1} parent=1 // pred_check
      _
    $region39: #{deep_nn_forward.1} parent=1 // pred_check_branch
      %91 = sbr.rel (0) target = $region41
    $region40: #{deep_nn_forward.1} parent=1 // pred_region
      %92 = dma.done [#allocation3], 1024
    $region41: #{deep_nn_forward.1} parent=1 // pred_fallthru
      _
    // Predicated region
    $region42: #{deep_nn_forward.1} parent=1 // pred_check
      _
    $region43: #{deep_nn_forward.1} parent=1 // pred_check_branch
      %94 = sbr.rel (0) target = $region45
    $region44: #{deep_nn_forward.1} parent=1 // pred_region
      %95 = dma.done [#allocation5], 16
    $region45: #{deep_nn_forward.1} parent=1 // pred_fallthru
      _
    // Predicated region
    $region46: #{deep_nn_forward.1} parent=1 // pred_check
      _
    $region47: #{deep_nn_forward.1} parent=1 // pred_check_branch
      %97 = sbr.rel (0) target = $region49
    $region48: #{deep_nn_forward.1} parent=1 // pred_region
      %98 = dma.done [#allocation5], 1024
    $region49: #{deep_nn_forward.1} parent=1 // pred_fallthru
      _
    // Predicated region
    $region50: #{deep_nn_forward.1} parent=1 // pred_check
      _
    $region51: #{deep_nn_forward.1} parent=1 // pred_check_branch
      %100 = sbr.rel (0) target = $region53
    $region52: #{deep_nn_forward.1} parent=1 // pred_region
      %101 = dma.done [#allocation8], 16
    $region53: #{deep_nn_forward.1} parent=1 // pred_fallthru
      _
    // Predicated region
    $region54: #{deep_nn_forward.1} parent=1 // pred_check
      _
    $region55: #{deep_nn_forward.1} parent=1 // pred_check_branch
      %103 = sbr.rel (0) target = $region57
    $region56: #{deep_nn_forward.1} parent=1 // pred_region
      %104 = dma.done [#allocation8], 1024
    $region57: #{deep_nn_forward.1} parent=1 // pred_fallthru
      _
    // Predicated region
    $region58: #{deep_nn_forward.1} parent=1 // pred_check
      _
    $region59: #{deep_nn_forward.1} parent=1 // pred_check_branch
      %106 = sbr.rel (0) target = $region61
    $region60: #{deep_nn_forward.1} parent=1 // pred_region
      %107 = dma.done [#allocation11], 16
    $region61: #{deep_nn_forward.1} parent=1 // pred_fallthru
      _
    %v109 = vld [vmem:[%s0] sm:$0xff]
    %v110 = vld [vmem:[#allocation2] sm:$0xf]
    %v111 = vld [vmem:[#allocation2 + $0x4] sm:$0xf]
    %v112 = vld [vmem:[#allocation2 + $0x8] sm:$0xf]
    %v113 = vld [vmem:[#allocation2 + $0xc] sm:$0xf]
    %v114 = vld [vmem:[#allocation2 + $0x10] sm:$0xf]
    %v115 = vld [vmem:[#allocation2 + $0x14] sm:$0xf]
    %v116 = vld [vmem:[#allocation2 + $0x18] sm:$0xf]
    %v117 = vld [vmem:[#allocation2 + $0x1c] sm:$0xf]
    %v118 = vld [vmem:[#allocation2 + $0x20] sm:$0xf]
    %v119 = vld [vmem:[#allocation2 + $0x24] sm:$0xf]
    %v120 = vld [vmem:[#allocation2 + $0x28] sm:$0xf]
    %v121 = vld [vmem:[#allocation2 + $0x2c] sm:$0xf]
    %v122 = vld [vmem:[#allocation2 + $0x30] sm:$0xf]
    %v123 = vld [vmem:[#allocation2 + $0x34] sm:$0xf]
    %v124 = vld [vmem:[#allocation2 + $0x38] sm:$0xf]
    %v125 = vld [vmem:[#allocation2 + $0x3c] sm:$0xf]
    %v126 = vld [vmem:[#allocation4] sm:$0x1]
    %v127 = vpack.c.bf16 %v109, %v109
    %v129 = vlaneseq
    %v130 = vshrl.u32 %v129, 7
    %v131 = vsub.s32 0, %v130
    %v132 = vrot.slane %v126, %v131
    %v150 = vunpack.c.l.b16 %v110
    %v151 = vunpack.c.l.b16 %v111
    %v152 = vunpack.c.l.b16 %v112
    %v153 = vunpack.c.l.b16 %v113
    %v154 = vunpack.c.l.b16 %v114
    %v155 = vunpack.c.l.b16 %v115
    %v156 = vunpack.c.l.b16 %v116
    %v157 = vunpack.c.l.b16 %v117
    %v158 = vunpack.c.l.b16 %v118
    %v159 = vunpack.c.l.b16 %v119
    %v160 = vunpack.c.l.b16 %v120
    %v161 = vunpack.c.l.b16 %v121
    %v162 = vunpack.c.l.b16 %v122
    %v163 = vunpack.c.l.b16 %v123
    %v164 = vunpack.c.l.b16 %v124
    %v165 = vunpack.c.l.b16 %v125
    %v166 = vpack.c.b16 %v151, %v150
    %v167 = vpack.c.b16 %v153, %v152
    %v168 = vpack.c.b16 %v155, %v154
    %v169 = vpack.c.b16 %v157, %v156
    %v170 = vpack.c.b16 %v159, %v158
    %v171 = vpack.c.b16 %v161, %v160
    %v172 = vpack.c.b16 %v163, %v162
    %v173 = vpack.c.b16 %v165, %v164
    %182 = vmatprep.subr.bf16.mxu0 0
    %183 = vmatpush1.bf16.msra.mxu0 %v166
    %184 = vmatprep.subr.bf16.mxu0 0
    %185 = vmatpush1.bf16.msra.mxu0 %v167
    %186 = vmatprep.subr.bf16.mxu0 0
    %187 = vmatpush1.bf16.msra.mxu0 %v168
    %188 = vmatprep.subr.bf16.mxu0 0
    %189 = vmatpush1.bf16.msra.mxu0 %v169
    %190 = vmatprep.subr.bf16.mxu0 0
    %191 = vmatpush1.bf16.msra.mxu0 %v170
    %192 = vmatprep.subr.bf16.mxu0 0
    %193 = vmatpush1.bf16.msra.mxu0 %v171
    %194 = vmatprep.subr.bf16.mxu0 0
    %195 = vmatpush1.bf16.msra.mxu0 %v172
    %196 = vmatprep.subr.bf16.mxu0 0
    %197 = vmatpush1.bf16.msra.mxu0 %v173
    %198 = vmatprep.subr.bf16.mxu0 0
    %199 = vmatpush1.bf16.msra.mxu0 0
    %200 = vmatprep.subr.bf16.mxu0 0
    %201 = vmatpush1.bf16.msra.mxu0 0
    %202 = vmatprep.subr.bf16.mxu0 0
    %203 = vmatpush1.bf16.msra.mxu0 0
    %204 = vmatprep.subr.bf16.mxu0 0
    %205 = vmatpush1.bf16.msra.mxu0 0
    %206 = vmatprep.subr.bf16.mxu0 0
    %207 = vmatpush1.bf16.msra.mxu0 0
    %208 = vmatprep.subr.bf16.mxu0 0
    %209 = vmatpush1.bf16.msra.mxu0 0
    %210 = vmatprep.subr.bf16.mxu0 0
    %211 = vmatpush1.bf16.msra.mxu0 0
    %212 = vmatprep.subr.bf16.mxu0 0
    %213 = vmatpush1.bf16.msra.mxu0 0
    %214 = vmatprep.mubr.bf16.mxu0 0
    %215 = vmatmul.mubr.bf16.gmra.mrb[0].mxu0 %v127
    %v216 = vpop.f32.mrb[0].mxu0
    %v217 = vadd.f32 %v132, %v216
    %v218 = vpop.f32.mrb[0].mxu0
    %v219 = vpop.f32.mrb[0].mxu0
    %v220 = vpop.f32.mrb[0].mxu0
    %221 = vdwg.mxu0
    %v222 = vmax.f32 %v217, 0.0
    %v223 = vld [vmem:[#allocation6] sm:$0xf]
    %v224 = vld [vmem:[#allocation6 + $0x4] sm:$0xf]
    %v225 = vld [vmem:[#allocation6 + $0x8] sm:$0xf]
    %v226 = vld [vmem:[#allocation6 + $0xc] sm:$0xf]
    %v227 = vld [vmem:[#allocation6 + $0x10] sm:$0xf]
    %v228 = vld [vmem:[#allocation6 + $0x14] sm:$0xf]
    %v229 = vld [vmem:[#allocation6 + $0x18] sm:$0xf]
    %v230 = vld [vmem:[#allocation6 + $0x1c] sm:$0xf]
    %v231 = vld [vmem:[#allocation6 + $0x20] sm:$0xf]
    %v232 = vld [vmem:[#allocation6 + $0x24] sm:$0xf]
    %v233 = vld [vmem:[#allocation6 + $0x28] sm:$0xf]
    %v234 = vld [vmem:[#allocation6 + $0x2c] sm:$0xf]
    %v235 = vld [vmem:[#allocation6 + $0x30] sm:$0xf]
    %v236 = vld [vmem:[#allocation6 + $0x34] sm:$0xf]
    %v237 = vld [vmem:[#allocation6 + $0x38] sm:$0xf]
    %v238 = vld [vmem:[#allocation6 + $0x3c] sm:$0xf]
    %v239 = vld [vmem:[#allocation7] sm:$0x1]
    %v240 = vpack.c.bf16 %v222, %v222
    %v242 = vlaneseq
    %v243 = vshrl.u32 %v242, 7
    %v244 = vsub.s32 0, %v243
    %v245 = vrot.slane %v239, %v244
    %v263 = vunpack.c.l.b16 %v223
    %v264 = vunpack.c.l.b16 %v224
    %v265 = vunpack.c.l.b16 %v225
    %v266 = vunpack.c.l.b16 %v226
    %v267 = vunpack.c.l.b16 %v227
    %v268 = vunpack.c.l.b16 %v228
    %v269 = vunpack.c.l.b16 %v229
    %v270 = vunpack.c.l.b16 %v230
    %v271 = vunpack.c.l.b16 %v231
    %v272 = vunpack.c.l.b16 %v232
    %v273 = vunpack.c.l.b16 %v233
    %v274 = vunpack.c.l.b16 %v234
    %v275 = vunpack.c.l.b16 %v235
    %v276 = vunpack.c.l.b16 %v236
    %v277 = vunpack.c.l.b16 %v237
    %v278 = vunpack.c.l.b16 %v238
    %v279 = vpack.c.b16 %v264, %v263
    %v280 = vpack.c.b16 %v266, %v265
    %v281 = vpack.c.b16 %v268, %v267
    %v282 = vpack.c.b16 %v270, %v269
    %v283 = vpack.c.b16 %v272, %v271
    %v284 = vpack.c.b16 %v274, %v273
    %v285 = vpack.c.b16 %v276, %v275
    %v286 = vpack.c.b16 %v278, %v277
    %295 = vmatprep.subr.bf16.mxu0 0
    %296 = vmatpush1.bf16.msra.mxu0 %v279
    %297 = vmatprep.subr.bf16.mxu0 0
    %298 = vmatpush1.bf16.msra.mxu0 %v280
    %299 = vmatprep.subr.bf16.mxu0 0
    %300 = vmatpush1.bf16.msra.mxu0 %v281
    %301 = vmatprep.subr.bf16.mxu0 0
    %302 = vmatpush1.bf16.msra.mxu0 %v282
    %303 = vmatprep.subr.bf16.mxu0 0
    %304 = vmatpush1.bf16.msra.mxu0 %v283
    %305 = vmatprep.subr.bf16.mxu0 0
    %306 = vmatpush1.bf16.msra.mxu0 %v284
    %307 = vmatprep.subr.bf16.mxu0 0
    %308 = vmatpush1.bf16.msra.mxu0 %v285
    %309 = vmatprep.subr.bf16.mxu0 0
    %310 = vmatpush1.bf16.msra.mxu0 %v286
    %311 = vmatprep.subr.bf16.mxu0 0
    %312 = vmatpush1.bf16.msra.mxu0 0
    %313 = vmatprep.subr.bf16.mxu0 0
    %314 = vmatpush1.bf16.msra.mxu0 0
    %315 = vmatprep.subr.bf16.mxu0 0
    %316 = vmatpush1.bf16.msra.mxu0 0
    %317 = vmatprep.subr.bf16.mxu0 0
    %318 = vmatpush1.bf16.msra.mxu0 0
    %319 = vmatprep.subr.bf16.mxu0 0
    %320 = vmatpush1.bf16.msra.mxu0 0
    %321 = vmatprep.subr.bf16.mxu0 0
    %322 = vmatpush1.bf16.msra.mxu0 0
    %323 = vmatprep.subr.bf16.mxu0 0
    %324 = vmatpush1.bf16.msra.mxu0 0
    %325 = vmatprep.subr.bf16.mxu0 0
    %326 = vmatpush1.bf16.msra.mxu0 0
    %327 = vmatprep.mubr.bf16.mxu0 0
    %328 = vmatmul.mubr.bf16.gmra.mrb[0].mxu0 %v240
    %v329 = vpop.f32.mrb[0].mxu0
    %v330 = vadd.f32 %v245, %v329
    %v331 = vpop.f32.mrb[0].mxu0
    %v332 = vpop.f32.mrb[0].mxu0
    %v333 = vpop.f32.mrb[0].mxu0
    %334 = vdwg.mxu0
    %v335 = vmax.f32 %v330, 0.0
    %v336 = vld [vmem:[#allocation9] sm:$0xf]
    %v337 = vld [vmem:[#allocation9 + $0x4] sm:$0xf]
    %v338 = vld [vmem:[#allocation9 + $0x8] sm:$0xf]
    %v339 = vld [vmem:[#allocation9 + $0xc] sm:$0xf]
    %v340 = vld [vmem:[#allocation9 + $0x10] sm:$0xf]
    %v341 = vld [vmem:[#allocation9 + $0x14] sm:$0xf]
    %v342 = vld [vmem:[#allocation9 + $0x18] sm:$0xf]
    %v343 = vld [vmem:[#allocation9 + $0x1c] sm:$0xf]
    %v344 = vld [vmem:[#allocation9 + $0x20] sm:$0xf]
    %v345 = vld [vmem:[#allocation9 + $0x24] sm:$0xf]
    %v346 = vld [vmem:[#allocation9 + $0x28] sm:$0xf]
    %v347 = vld [vmem:[#allocation9 + $0x2c] sm:$0xf]
    %v348 = vld [vmem:[#allocation9 + $0x30] sm:$0xf]
    %v349 = vld [vmem:[#allocation9 + $0x34] sm:$0xf]
    %v350 = vld [vmem:[#allocation9 + $0x38] sm:$0xf]
    %v351 = vld [vmem:[#allocation9 + $0x3c] sm:$0xf]
    %v352 = vld [vmem:[#allocation10] sm:$0x1]
    %v353 = vpack.c.bf16 %v335, %v335
    %v355 = vlaneseq
    %v356 = vshrl.u32 %v355, 7
    %v357 = vsub.s32 0, %v356
    %v358 = vrot.slane %v352, %v357
    %v376 = vunpack.c.l.b16 %v336
    %v377 = vunpack.c.l.b16 %v337
    %v378 = vunpack.c.l.b16 %v338
    %v379 = vunpack.c.l.b16 %v339
    %v380 = vunpack.c.l.b16 %v340
    %v381 = vunpack.c.l.b16 %v341
    %v382 = vunpack.c.l.b16 %v342
    %v383 = vunpack.c.l.b16 %v343
    %v384 = vunpack.c.l.b16 %v344
    %v385 = vunpack.c.l.b16 %v345
    %v386 = vunpack.c.l.b16 %v346
    %v387 = vunpack.c.l.b16 %v347
    %v388 = vunpack.c.l.b16 %v348
    %v389 = vunpack.c.l.b16 %v349
    %v390 = vunpack.c.l.b16 %v350
    %v391 = vunpack.c.l.b16 %v351
    %v392 = vpack.c.b16 %v377, %v376
    %v393 = vpack.c.b16 %v379, %v378
    %v394 = vpack.c.b16 %v381, %v380
    %v395 = vpack.c.b16 %v383, %v382
    %v396 = vpack.c.b16 %v385, %v384
    %v397 = vpack.c.b16 %v387, %v386
    %v398 = vpack.c.b16 %v389, %v388
    %v399 = vpack.c.b16 %v391, %v390
    %408 = vmatprep.subr.bf16.mxu0 0
    %409 = vmatpush1.bf16.msra.mxu0 %v392
    %410 = vmatprep.subr.bf16.mxu0 0
    %411 = vmatpush1.bf16.msra.mxu0 %v393
    %412 = vmatprep.subr.bf16.mxu0 0
    %413 = vmatpush1.bf16.msra.mxu0 %v394
    %414 = vmatprep.subr.bf16.mxu0 0
    %415 = vmatpush1.bf16.msra.mxu0 %v395
    %416 = vmatprep.subr.bf16.mxu0 0
    %417 = vmatpush1.bf16.msra.mxu0 %v396
    %418 = vmatprep.subr.bf16.mxu0 0
    %419 = vmatpush1.bf16.msra.mxu0 %v397
    %420 = vmatprep.subr.bf16.mxu0 0
    %421 = vmatpush1.bf16.msra.mxu0 %v398
    %422 = vmatprep.subr.bf16.mxu0 0
    %423 = vmatpush1.bf16.msra.mxu0 %v399
    %424 = vmatprep.subr.bf16.mxu0 0
    %425 = vmatpush1.bf16.msra.mxu0 0
    %426 = vmatprep.subr.bf16.mxu0 0
    %427 = vmatpush1.bf16.msra.mxu0 0
    %428 = vmatprep.subr.bf16.mxu0 0
    %429 = vmatpush1.bf16.msra.mxu0 0
    %430 = vmatprep.subr.bf16.mxu0 0
    %431 = vmatpush1.bf16.msra.mxu0 0
    %432 = vmatprep.subr.bf16.mxu0 0
    %433 = vmatpush1.bf16.msra.mxu0 0
    %434 = vmatprep.subr.bf16.mxu0 0
    %435 = vmatpush1.bf16.msra.mxu0 0
    %436 = vmatprep.subr.bf16.mxu0 0
    %437 = vmatpush1.bf16.msra.mxu0 0
    %438 = vmatprep.subr.bf16.mxu0 0
    %439 = vmatpush1.bf16.msra.mxu0 0
    %440 = vmatprep.mubr.bf16.mxu0 0
    %441 = vmatmul.mubr.bf16.gmra.mrb[0].mxu0 %v353
    %v442 = vpop.f32.mrb[0].mxu0
    %v443 = vadd.f32 %v358, %v442
    %v444 = vpop.f32.mrb[0].mxu0
    %v445 = vpop.f32.mrb[0].mxu0
    %v446 = vpop.f32.mrb[0].mxu0
    %447 = vdwg.mxu0
    %v448 = vmax.f32 %v443, 0.0
    %v449 = vld [vmem:[%s7] sm:$0xf]
    %v450 = vld [vmem:[%s7 + $0x4] sm:$0xf]
    %v451 = vld [vmem:[%s7 + $0x8] sm:$0xf]
    %v452 = vld [vmem:[%s7 + $0xc] sm:$0xf]
    %v453 = vld [vmem:[%s7 + $0x10] sm:$0xf]
    %v454 = vld [vmem:[%s7 + $0x14] sm:$0xf]
    %v455 = vld [vmem:[%s7 + $0x18] sm:$0xf]
    %v456 = vld [vmem:[%s7 + $0x1c] sm:$0xf]
    %v457 = vld [vmem:[%s7 + $0x20] sm:$0xf]
    %v458 = vld [vmem:[%s7 + $0x24] sm:$0xf]
    %v459 = vld [vmem:[%s7 + $0x28] sm:$0xf]
    %v460 = vld [vmem:[%s7 + $0x2c] sm:$0xf]
    %v461 = vld [vmem:[%s7 + $0x30] sm:$0xf]
    %v462 = vld [vmem:[%s7 + $0x34] sm:$0xf]
    %v463 = vld [vmem:[%s7 + $0x38] sm:$0xf]
    %v464 = vld [vmem:[%s7 + $0x3c] sm:$0xf]
    %v465 = vld [vmem:[%s8] sm:$0x1]
    %v466 = vpack.c.bf16 %v448, %v448
    %v468 = vlaneseq
    %v469 = vshrl.u32 %v468, 7
    %v470 = vsub.s32 0, %v469
    %v471 = vrot.slane %v465, %v470
    %v489 = vunpack.c.l.b16 %v449
    %v490 = vunpack.c.l.b16 %v450
    %v491 = vunpack.c.l.b16 %v451
    %v492 = vunpack.c.l.b16 %v452
    %v493 = vunpack.c.l.b16 %v453
    %v494 = vunpack.c.l.b16 %v454
    %v495 = vunpack.c.l.b16 %v455
    %v496 = vunpack.c.l.b16 %v456
    %v497 = vunpack.c.l.b16 %v457
    %v498 = vunpack.c.l.b16 %v458
    %v499 = vunpack.c.l.b16 %v459
    %v500 = vunpack.c.l.b16 %v460
    %v501 = vunpack.c.l.b16 %v461
    %v502 = vunpack.c.l.b16 %v462
    %v503 = vunpack.c.l.b16 %v463
    %v504 = vunpack.c.l.b16 %v464
    %v505 = vpack.c.b16 %v490, %v489
    %v506 = vpack.c.b16 %v492, %v491
    %v507 = vpack.c.b16 %v494, %v493
    %v508 = vpack.c.b16 %v496, %v495
    %v509 = vpack.c.b16 %v498, %v497
    %v510 = vpack.c.b16 %v500, %v499
    %v511 = vpack.c.b16 %v502, %v501
    %v512 = vpack.c.b16 %v504, %v503
    %521 = vmatprep.subr.bf16.mxu0 0
    %522 = vmatpush1.bf16.msra.mxu0 %v505
    %523 = vmatprep.subr.bf16.mxu0 0
    %524 = vmatpush1.bf16.msra.mxu0 %v506
    %525 = vmatprep.subr.bf16.mxu0 0
    %526 = vmatpush1.bf16.msra.mxu0 %v507
    %527 = vmatprep.subr.bf16.mxu0 0
    %528 = vmatpush1.bf16.msra.mxu0 %v508
    %529 = vmatprep.subr.bf16.mxu0 0
    %530 = vmatpush1.bf16.msra.mxu0 %v509
    %531 = vmatprep.subr.bf16.mxu0 0
    %532 = vmatpush1.bf16.msra.mxu0 %v510
    %533 = vmatprep.subr.bf16.mxu0 0
    %534 = vmatpush1.bf16.msra.mxu0 %v511
    %535 = vmatprep.subr.bf16.mxu0 0
    %536 = vmatpush1.bf16.msra.mxu0 %v512
    %537 = vmatprep.subr.bf16.mxu0 0
    %538 = vmatpush1.bf16.msra.mxu0 0
    %539 = vmatprep.subr.bf16.mxu0 0
    %540 = vmatpush1.bf16.msra.mxu0 0
    %541 = vmatprep.subr.bf16.mxu0 0
    %542 = vmatpush1.bf16.msra.mxu0 0
    %543 = vmatprep.subr.bf16.mxu0 0
    %544 = vmatpush1.bf16.msra.mxu0 0
    %545 = vmatprep.subr.bf16.mxu0 0
    %546 = vmatpush1.bf16.msra.mxu0 0
    %547 = vmatprep.subr.bf16.mxu0 0
    %548 = vmatpush1.bf16.msra.mxu0 0
    %549 = vmatprep.subr.bf16.mxu0 0
    %550 = vmatpush1.bf16.msra.mxu0 0
    %551 = vmatprep.subr.bf16.mxu0 0
    %552 = vmatpush1.bf16.msra.mxu0 0
    %553 = vmatprep.mubr.bf16.mxu0 0
    %554 = vmatmul.mubr.bf16.gmra.mrb[0].mxu0 %v466
    %v555 = vpop.f32.mrb[0].mxu0
    %v556 = vadd.f32 %v471, %v555
    %v557 = vpop.f32.mrb[0].mxu0
    %v558 = vpop.f32.mrb[0].mxu0
    %v559 = vpop.f32.mrb[0].mxu0
    %560 = vdwg.mxu0
    %561 = vst [vmem:[%s9] sm:$0xff] %v556
    // Predicated region
    $region62: #{deep_nn_forward.1} parent=1 // pred_check
      _
    $region63: #{deep_nn_forward.1} parent=1 // pred_check_branch
      %563 = sbr.rel (0) target = $region65
    $region64: #{deep_nn_forward.1} parent=1 // pred_region
      _
    $region65: #{deep_nn_forward.1} parent=1 // pred_fallthru
      _
    // Predicated region
    $region66: #{deep_nn_forward.1} parent=1 // pred_check
      _
    $region67: #{deep_nn_forward.1} parent=1 // pred_check_branch
      %565 = sbr.rel (0) target = $region69
    $region68: #{deep_nn_forward.1} parent=1 // pred_region
      _
    $region69: #{deep_nn_forward.1} parent=1 // pred_fallthru
      _
    %566 = vsyncpa [#allocation3], 1
    %567 = vsyncpa [#allocation5], 1
    %568 = vsyncpa [#allocation8], 1
    %569 = vsyncpa [#allocation11], 1

</llo_original>
